<compile_context>
chip_gen: v6e
topology: v6e:2x2x1
jax: 0.10.0
libtpu: 0.0.40
codegen_flags: <defaults>
</compile_context>

<pallas_src>
import functools

import jax
import jax.numpy as jnp
from jax.experimental import pallas as pl
from jax.experimental.pallas import tpu as pltpu


def diffusion_train_loss_kernel(a_ref, b_ref,          # SMEM (B,) q_sample coeffs
                                x_ref, n_ref, w_ref,   # VMEM tiles
                                out_ref,               # (1,1) per-batch partial loss
                                acc_ref,               # VMEM (C, T) accumulator
                                *, channels):
    bidx = pl.program_id(0)
    j = pl.program_id(1)

    @pl.when(j == 0)
    def _init():
        acc_ref[...] = jnp.zeros_like(acc_ref)

    # bf16 -> f32 right after load; keep all elementwise math in f32.
    x = x_ref[...].astype(jnp.float32)                       # (C, T)
    n = n_ref[...].astype(jnp.float32)                       # (C, T)

    # q_sample: x_noisy = sqrt(acp[t]) * x_start + sqrt(1 - acp[t]) * noise
    x_noisy = a_ref[bidx] * x + b_ref[bidx] * n              # (C, T)

    # Synthetic denoiser: 1x1 conv over channels.  C is tiny (< 32), so stay
    # on the VPU with C broadcast-FMA passes rather than a thin MXU matmul.
    wmat = w_ref[...]                                        # (C, C) f32, resident
    pred = wmat[:, 0:1] * x_noisy[0:1, :]
    for c in range(1, channels):                             # static unroll
        pred = pred + wmat[:, c:c + 1] * x_noisy[c:c + 1, :]  # (C, T)

    # Huber / smooth-L1 (beta = 1) partial, accumulated elementwise (pure VPU);
    # zero-padded lanes contribute exactly 0.
    diff = pred - n
    absd = jnp.abs(diff)
    huber = jnp.where(absd < 1.0, 0.5 * diff * diff, absd - 0.5)
    acc_ref[...] += huber

    # One cross-lane/sublane reduction per batch element, at the last HW tile.
    @pl.when(j == pl.num_programs(1) - 1)
    def _finalize():
        out_ref[...] = jnp.sum(acc_ref[...], keepdims=True)


def _pick_hw_tile(hw, target_lanes=8192):
    """Lane-dense HW tiling: tile T is a multiple of 128; the spatial axis is
    zero-padded up to num_tiles * T (zero padding contributes 0 to the loss)."""
    hw_128 = ((hw + 127) // 128) * 128
    if hw_128 <= target_lanes:
        return hw_128, 1
    num_tiles = -(-hw_128 // target_lanes)
    tile = -(-hw_128 // (num_tiles * 128)) * 128
    return tile, num_tiles


def diffusion_train_loss(x_start, noise, t, sqrt_acp, sqrt_1m_acp, w):
    """One diffusion training-step loss (what model(mode='train', ...) returns)."""
    B, C, H, W = x_start.shape
    HW = H * W
    n_total = float(B * C * HW)

    # bf16 HBM storage for the two big operands (bandwidth-bound kernel).
    x = x_start.reshape(B, C, HW).astype(jnp.bfloat16)
    n = noise.reshape(B, C, HW).astype(jnp.bfloat16)

    a = sqrt_acp[t].astype(jnp.float32)       # (B,) schedule gather (glue)
    b = sqrt_1m_acp[t].astype(jnp.float32)    # (B,)
    w = w.astype(jnp.float32)

    T, num_tiles = _pick_hw_tile(HW)
    padded = T * num_tiles
    if padded != HW:
        x = jnp.pad(x, ((0, 0), (0, 0), (0, padded - HW)))
        n = jnp.pad(n, ((0, 0), (0, 0), (0, padded - HW)))

    kernel = functools.partial(diffusion_train_loss_kernel, channels=C)

    grid_spec = pltpu.PrefetchScalarGridSpec(
        num_scalar_prefetch=0,
        grid=(B, num_tiles),
        in_specs=[
            pl.BlockSpec(memory_space=pltpu.MemorySpace.SMEM),    # a coeffs (B,)
            pl.BlockSpec(memory_space=pltpu.MemorySpace.SMEM),    # b coeffs (B,)
            pl.BlockSpec((None, C, T), lambda i, j: (i, 0, j)),   # x_start tile
            pl.BlockSpec((None, C, T), lambda i, j: (i, 0, j)),   # noise tile
            pl.BlockSpec((C, C), lambda i, j: (0, 0)),            # resident weight
        ],
        out_specs=pl.BlockSpec((None, 1, 1), lambda i, j: (i, 0, 0)),
        scratch_shapes=[pltpu.VMEM((C, T), jnp.float32)],
    )

    partial_losses = pl.pallas_call(
        kernel,
        out_shape=jax.ShapeDtypeStruct((B, 1, 1), jnp.float32),
        grid_spec=grid_spec,
        compiler_params=pltpu.CompilerParams(
            # batch axis parallel (2 TCs on v7x); HW axis carries the accumulator.
            dimension_semantics=("parallel", "arbitrary")),
    )(a, b, x, n, w)

    return jnp.sum(partial_losses) / n_total   # mean over the un-padded elements


def reference_loss(x_start, noise, t, sqrt_acp, sqrt_1m_acp, w):
    B, C, H, W = x_start.shape
    a = sqrt_acp[t].reshape(B, 1, 1, 1)
    b = sqrt_1m_acp[t].reshape(B, 1, 1, 1)
    x_noisy = a * x_start + b * noise
    pred = jnp.einsum("oc,bchw->bohw", w, x_noisy)
    diff = pred - noise
    absd = jnp.abs(diff)
    huber = jnp.where(absd < 1.0, 0.5 * diff * diff, absd - 0.5)
    return jnp.mean(huber)


if __name__ == "__main__":
    # TODO(synk): training-loop orchestration (optimizer.zero_grad/backward/step,
    # tqdm, EarlyStopping, .mat file I/O, checkpoint saving) from
    # SimpleDiffusionTrainer.forward has no Pallas equivalent and is not emulated.
    key = jax.random.PRNGKey(0)
    k1, k2, k3, k4 = jax.random.split(key, 4)

    B, C, H, W = 2, 4, 16, 16
    timesteps = 8

    x_start = jax.random.normal(k1, (B, C, H, W), dtype=jnp.float32)
    noise = jax.random.normal(k2, (B, C, H, W), dtype=jnp.float32)
    # t = torch.randint(0, timesteps, (batch_size,)).long()
    t = jax.random.randint(k3, (B,), 0, timesteps)

    # Linear beta schedule -> alphas_cumprod (deterministic JAX glue).
    betas = jnp.linspace(1e-4, 0.02, timesteps, dtype=jnp.float32)
    alphas_cumprod = jnp.cumprod(1.0 - betas)
    sqrt_acp = jnp.sqrt(alphas_cumprod)
    sqrt_1m_acp = jnp.sqrt(1.0 - alphas_cumprod)

    # Deterministic synthetic denoiser weight (1x1 conv over channels).
    w = 0.1 * jax.random.normal(k4, (C, C), dtype=jnp.float32)

    loss = diffusion_train_loss(x_start, noise, t, sqrt_acp, sqrt_1m_acp, w)
    jax.block_until_ready(loss)

    # Reference uses the same bf16-rounded operands the kernel reads from HBM.
    x_bf = x_start.astype(jnp.bfloat16).astype(jnp.float32)
    n_bf = noise.astype(jnp.bfloat16).astype(jnp.float32)
    ref = reference_loss(x_bf, n_bf, t, sqrt_acp, sqrt_1m_acp, w)
    assert jnp.allclose(loss, ref, rtol=1e-4, atol=1e-5), (loss, ref)

    print("KERNEL_OK")
</pallas_src>

<mosaic_0001>
module attributes {stable_mosaic.version = 11 : i64} {
  func.func @diffusion_train_loss_kernel(%arg0: i32, %arg1: i32, %arg2: memref<2xf32, #tpu.memory_space<smem>>, %arg3: memref<2xf32, #tpu.memory_space<smem>>, %arg4: memref<1x4x256xbf16, #tpu.memory_space<vmem>>, %arg5: memref<1x4x256xbf16, #tpu.memory_space<vmem>>, %arg6: memref<4x4xf32, #tpu.memory_space<vmem>>, %arg7: memref<1x1x1xf32, #tpu.memory_space<vmem>>, %arg8: memref<4x256xf32, #tpu.memory_space<vmem>>) attributes {dimension_semantics = [#tpu.dimension_semantics<parallel>, #tpu.dimension_semantics<arbitrary>], iteration_bounds = array<i64: 2, 1>, scalar_prefetch = 0 : i64, scratch_operands = 1 : i64, tpu.core_type = #tpu.core_type<tc>, window_params = [{transform_indices = @transform_0, window_bounds = array<i64: 2>}, {transform_indices = @transform_1, window_bounds = array<i64: 2>}, {transform_indices = @transform_2, window_bounds = array<i64: 1, 4, 256>}, {transform_indices = @transform_3, window_bounds = array<i64: 1, 4, 256>}, {pipeline_mode = #tpu.pipeline_mode<synchronous>, transform_indices = @transform_4, window_bounds = array<i64: 4, 4>}, {transform_indices = @transform_5, window_bounds = array<i64: 1, 1, 1>}]} {
    %c0_i32 = arith.constant 0 : i32
    %0 = arith.cmpi eq, %arg1, %c0_i32 : i32
    %1 = arith.extui %0 : i1 to i32
    %c0_i32_0 = arith.constant 0 : i32
    %2 = arith.cmpi ne, %1, %c0_i32_0 : i32
    scf.if %2 {
      %cst_16 = arith.constant 0.000000e+00 : f32
      %58 = vector.broadcast %cst_16 : f32 to vector<4x256xf32>
      %c0_17 = arith.constant 0 : index
      %c0_18 = arith.constant 0 : index
      %59 = vector.load %arg8[%c0_17, %c0_18] : memref<4x256xf32, #tpu.memory_space<vmem>>, vector<4x256xf32>
      tpu.vector_store %arg8[%c0_17, %c0_18], %58 {strides = array<i32>} : memref<4x256xf32, #tpu.memory_space<vmem>>, vector<4x256xf32>,
    } else {
    }
    %c0 = arith.constant 0 : index
    %c0_1 = arith.constant 0 : index
    %c0_2 = arith.constant 0 : index
    %3 = vector.load %arg4[%c0, %c0_1, %c0_2] : memref<1x4x256xbf16, #tpu.memory_space<vmem>>, vector<1x4x256xbf16>
    %4 = vector.shape_cast %3 : vector<1x4x256xbf16> to vector<4x256xbf16>
    %5 = arith.extf %4 : vector<4x256xbf16> to vector<4x256xf32>
    %c0_3 = arith.constant 0 : index
    %c0_4 = arith.constant 0 : index
    %c0_5 = arith.constant 0 : index
    %6 = vector.load %arg5[%c0_3, %c0_4, %c0_5] : memref<1x4x256xbf16, #tpu.memory_space<vmem>>, vector<1x4x256xbf16>
    %7 = vector.shape_cast %6 : vector<1x4x256xbf16> to vector<4x256xbf16>
    %8 = arith.extf %7 : vector<4x256xbf16> to vector<4x256xf32>
    %9 = arith.index_cast %arg0 : i32 to index
    %10 = memref.load %arg2[%9] : memref<2xf32, #tpu.memory_space<smem>>
    %11 = vector.broadcast %10 : f32 to vector<4x256xf32>
    %12 = arith.mulf %11, %5 : vector<4x256xf32>
    %13 = arith.index_cast %arg0 : i32 to index
    %14 = memref.load %arg3[%13] : memref<2xf32, #tpu.memory_space<smem>>
    %15 = vector.broadcast %14 : f32 to vector<4x256xf32>
    %16 = arith.mulf %15, %8 : vector<4x256xf32>
    %17 = arith.addf %12, %16 : vector<4x256xf32>
    %c0_6 = arith.constant 0 : index
    %c0_7 = arith.constant 0 : index
    %18 = vector.load %arg6[%c0_6, %c0_7] : memref<4x4xf32, #tpu.memory_space<vmem>>, vector<4x4xf32>
    %19 = vector.extract_strided_slice %18 {offsets = [0, 0], sizes = [4, 1], strides = [1, 1]} : vector<4x4xf32> to vector<4x1xf32>
    %20 = vector.extract_strided_slice %17 {offsets = [0, 0], sizes = [1, 256], strides = [1, 1]} : vector<4x256xf32> to vector<1x256xf32>
    %21 = vector.broadcast %19 : vector<4x1xf32> to vector<4x256xf32>
    %22 = vector.broadcast %20 : vector<1x256xf32> to vector<4x256xf32>
    %23 = arith.mulf %21, %22 : vector<4x256xf32>
    %24 = vector.extract_strided_slice %18 {offsets = [0, 1], sizes = [4, 1], strides = [1, 1]} : vector<4x4xf32> to vector<4x1xf32>
    %25 = vector.extract_strided_slice %17 {offsets = [1, 0], sizes = [1, 256], strides = [1, 1]} : vector<4x256xf32> to vector<1x256xf32>
    %26 = vector.broadcast %24 : vector<4x1xf32> to vector<4x256xf32>
    %27 = vector.broadcast %25 : vector<1x256xf32> to vector<4x256xf32>
    %28 = arith.mulf %26, %27 : vector<4x256xf32>
    %29 = arith.addf %23, %28 : vector<4x256xf32>
    %30 = vector.extract_strided_slice %18 {offsets = [0, 2], sizes = [4, 1], strides = [1, 1]} : vector<4x4xf32> to vector<4x1xf32>
    %31 = vector.extract_strided_slice %17 {offsets = [2, 0], sizes = [1, 256], strides = [1, 1]} : vector<4x256xf32> to vector<1x256xf32>
    %32 = vector.broadcast %30 : vector<4x1xf32> to vector<4x256xf32>
    %33 = vector.broadcast %31 : vector<1x256xf32> to vector<4x256xf32>
    %34 = arith.mulf %32, %33 : vector<4x256xf32>
    %35 = arith.addf %29, %34 : vector<4x256xf32>
    %36 = vector.extract_strided_slice %18 {offsets = [0, 3], sizes = [4, 1], strides = [1, 1]} : vector<4x4xf32> to vector<4x1xf32>
    %37 = vector.extract_strided_slice %17 {offsets = [3, 0], sizes = [1, 256], strides = [1, 1]} : vector<4x256xf32> to vector<1x256xf32>
    %38 = vector.broadcast %36 : vector<4x1xf32> to vector<4x256xf32>
    %39 = vector.broadcast %37 : vector<1x256xf32> to vector<4x256xf32>
    %40 = arith.mulf %38, %39 : vector<4x256xf32>
    %41 = arith.addf %35, %40 : vector<4x256xf32>
    %42 = arith.subf %41, %8 : vector<4x256xf32>
    %43 = math.absf %42 : vector<4x256xf32>
    %cst = arith.constant 1.000000e+00 : f32
    %44 = vector.broadcast %cst : f32 to vector<4x256xf32>
    %45 = arith.cmpf olt, %43, %44 : vector<4x256xf32>
    %cst_8 = arith.constant 5.000000e-01 : f32
    %46 = vector.broadcast %cst_8 : f32 to vector<4x256xf32>
    %47 = arith.mulf %46, %42 : vector<4x256xf32>
    %48 = arith.mulf %47, %42 : vector<4x256xf32>
    %cst_9 = arith.constant 5.000000e-01 : f32
    %49 = vector.broadcast %cst_9 : f32 to vector<4x256xf32>
    %50 = arith.subf %43, %49 : vector<4x256xf32>
    %51 = arith.select %45, %48, %50 : vector<4x256xi1>, vector<4x256xf32>
    %c0_10 = arith.constant 0 : index
    %c0_11 = arith.constant 0 : index
    %52 = vector.load %arg8[%c0_10, %c0_11] : memref<4x256xf32, #tpu.memory_space<vmem>>, vector<4x256xf32>
    %53 = arith.addf %52, %51 : vector<4x256xf32>
    %c0_12 = arith.constant 0 : index
    %c0_13 = arith.constant 0 : index
    %54 = vector.load %arg8[%c0_12, %c0_13] : memref<4x256xf32, #tpu.memory_space<vmem>>, vector<4x256xf32>
    tpu.vector_store %arg8[%c0_12, %c0_13], %53 {strides = array<i32>} : memref<4x256xf32, #tpu.memory_space<vmem>>, vector<4x256xf32>,
    %c0_i32_14 = arith.constant 0 : i32
    %55 = arith.cmpi eq, %arg1, %c0_i32_14 : i32
    %56 = arith.extui %55 : i1 to i32
    %c0_i32_15 = arith.constant 0 : i32
    %57 = arith.cmpi ne, %56, %c0_i32_15 : i32
    scf.if %57 {
      %c0_16 = arith.constant 0 : index
      %c0_17 = arith.constant 0 : index
      %58 = vector.load %arg8[%c0_16, %c0_17] : memref<4x256xf32, #tpu.memory_space<vmem>>, vector<4x256xf32>
      %59 = vector.shape_cast %58 : vector<4x256xf32> to vector<1x4x256xf32>
      %cst_18 = arith.constant dense<0.000000e+00> : vector<1xf32>
      %60 = vector.multi_reduction <add>, %59, %cst_18 [1, 2] : vector<1x4x256xf32> to vector<1xf32>
      %61 = vector.shape_cast %60 : vector<1xf32> to vector<1x1x1xf32>
      %62 = vector.extract %61[0, 0, 0] : f32 from vector<1x1x1xf32>
      %63 = vector.broadcast %62 : f32 to vector<1x1xf32>
      %c0_19 = arith.constant 0 : index
      %c0_20 = arith.constant 0 : index
      %c0_21 = arith.constant 0 : index
      %64 = vector.load %arg7[%c0_19, %c0_20, %c0_21] : memref<1x1x1xf32, #tpu.memory_space<vmem>>, vector<1x1x1xf32>
      %65 = vector.shape_cast %64 : vector<1x1x1xf32> to vector<1x1xf32>
      %66 = vector.shape_cast %63 : vector<1x1xf32> to vector<1x1x1xf32>
      tpu.vector_store %arg7[%c0_19, %c0_20, %c0_21], %66 {strides = array<i32>} : memref<1x1x1xf32, #tpu.memory_space<vmem>>, vector<1x1x1xf32>,
    } else {
    }
    return
  }
  func.func @transform_0(%arg0: i32, %arg1: i32) -> i32 {
    %c0_i32 = arith.constant 0 : i32
    %c0_i32_0 = arith.constant 0 : i32
    return %c0_i32 : i32
  }
  func.func @transform_1(%arg0: i32, %arg1: i32) -> i32 {
    %c0_i32 = arith.constant 0 : i32
    %c0_i32_0 = arith.constant 0 : i32
    return %c0_i32 : i32
  }
  func.func @transform_2(%arg0: i32, %arg1: i32) -> (i32, i32, i32) {
    %c0_i32 = arith.constant 0 : i32
    %c0_i32_0 = arith.constant 0 : i32
    return %arg0, %c0_i32, %arg1 : i32, i32, i32
  }
  func.func @transform_3(%arg0: i32, %arg1: i32) -> (i32, i32, i32) {
    %c0_i32 = arith.constant 0 : i32
    %c0_i32_0 = arith.constant 0 : i32
    return %arg0, %c0_i32, %arg1 : i32, i32, i32
  }
  func.func @transform_4(%arg0: i32, %arg1: i32) -> (i32, i32) {
    %c0_i32 = arith.constant 0 : i32
    %c0_i32_0 = arith.constant 0 : i32
    %c0_i32_1 = arith.constant 0 : i32
    return %c0_i32, %c0_i32_0 : i32, i32
  }
  func.func @transform_5(%arg0: i32, %arg1: i32) -> (i32, i32, i32) {
    %c0_i32 = arith.constant 0 : i32
    %c0_i32_0 = arith.constant 0 : i32
    %c0_i32_1 = arith.constant 0 : i32
    return %arg0, %c0_i32, %c0_i32_0 : i32, i32, i32
  }
}

</mosaic_0001>

<llo_original>
// kernel: tpu_custom_call.1
$region0: #{tpu_custom_call.1}
  #allocation0 [shape = 'u32[]', space=smem, size = 0x4, offset = 0x4, fixed_abs, tag = 'smem constant byte address 0x4 - core index']
  #allocation1 [shape = 'u32[144,128]{1,0:T(1,128)}', space=vmem, size = 0x12000, scoped, tag = 'internal scratch']
  #allocation2 [shape = 'f32[4,256]{1,0:T(4,128)}', space=vmem, size = 0x1000, scoped, tag = 'scratch operand']
  %s0 = inlined_call_operand.hbm [shape: f32[2], index: 0, kind: input, shape index: {}]
  %s1 = inlined_call_operand.vmem [shape: f32[2], index: 1, kind: input, shape index: {}]
  %s2 = inlined_call_operand.hbm [shape: bf16[2,4,256], index: 2, kind: input, shape index: {}]
  %s3 = inlined_call_operand.hbm [shape: bf16[2,4,256], index: 3, kind: input, shape index: {}]
  %s4 = inlined_call_operand.vmem [shape: f32[4,4], index: 4, kind: input, shape index: {}]
  %s5 = inlined_call_operand.vmem [shape: f32[2,1,1], index: 5, kind: output, shape index: {}]
  %s6 = sld [smem:[#allocation0]]
  $region77: #{tpu_custom_call.1} parent=0
    _
  %s8 = ssub.s32 1, %s6
  %s9 = scalar_select 0, %s8, %s6
  $region1: #{tpu_custom_call.1} parent=0
    #allocation3 [shape = 'u8[512]{0}', space=smem, size = 0x200, scoped, tag = 'input window, operand 0, single buffered']
    #allocation4 [shape = 's32[2]{0}', space=sflag, size = 0x8, scoped, tag = 'scoped memory for tpu_custom_call.1']
    #allocation5 [shape = 's32[2]{0}', space=sflag, size = 0x8, scoped, tag = 'scoped memory for tpu_custom_call.1']
    #allocation6 [shape = 's32[2]{0}', space=sflag, size = 0x8, scoped, tag = 'scoped memory for tpu_custom_call.1']
    #allocation7 [shape = 'u8[512]{0}', space=smem, size = 0x200, scoped, tag = 'input window, operand 1, single buffered']
    #allocation8 [shape = 'u8[4096]{0}', space=vmem, size = 0x1000, scoped, tag = 'input window, operand 2']
    #allocation9 [shape = 'u8[4096]{0}', space=vmem, size = 0x1000, scoped, tag = 'input window, operand 3']
    #allocation10 [shape = 's32[2]{0}', space=sflag, size = 0x8, scoped, tag = 'scoped memory for tpu_custom_call.1']
    %10 = vsyncpa [#allocation5], 0
    %11 = vsyncpa [#allocation6], 0
    %12 = vsyncpa [#allocation4], 0
    %s13 = scalar_lea.sflag [#allocation4], 1
    %14 = vsyncpa %s13, 0
    %15 = vsyncpa [#allocation10], 0
    %s16 = scalar_lea.sflag [#allocation10], 1
    %17 = vsyncpa %s16, 0
    loop: start=0, step=1, limit=4
    $region2: #{tpu_custom_call.1} parent=1 // loop_pre_header
      _
    $region3: #{tpu_custom_call.1} parent=1 // loop_header
      %s19 = sphi 0, %s23
      %p20 = scmp.ge.s32.totalorder %s19, 4
      %s26 = sphi 0, %s38
      %s27 = sphi 0, %s34
      %s28 = sphi 0, %s26
      %s29 = sphi 0, %s27
      %s30 = sphi 0, %s28
      %s31 = sphi 0, %s29
      %s39 = sphi 0, %s39
      %s41 = sphi 0, %s39
      %s42 = sphi 0, %s41
      %s56 = sphi 0, %s42
      %s60 = sphi 0, %s60
      %s62 = sphi 0, %s60
      %s63 = sphi 0, %s62
      %s77 = sphi 0, %s63
      %s85 = sphi 0, %s87
      %s88 = sphi 0, %s85
      %s89 = sphi 0, %s88
      %s105 = sphi 0, %s89
      %s113 = sphi 0, %s115
      %s116 = sphi 0, %s113
      %s117 = sphi 0, %s116
      %s133 = sphi 0, %s117
      %s137 = sphi 0, %s137
      %s139 = sphi 0, %s137
      %s140 = sphi 0, %s139
      %s154 = sphi 0, %s140
      %s160 = sphi 0, %s162
      %s163 = sphi 0, %s160
      %s164 = sphi 0, %s163
      %s180 = sphi 0, %s164
    $region4: #{tpu_custom_call.1} parent=1 // loop_header_branch
      %22 = sbr.rel (%p20) target = $region8
    $region5: #{tpu_custom_call.1} parent=1 // loop_body
      %s24 = ssub.s32 %s19, 1
      %s25 = ssub.s32 %s19, 2
      %s32 = sadd.s32 1, %s27
      %p33 = scmp.ge.s32.totalorder %s32, 1
      %s34 = scalar_select %p33, 0, %s32
      %s35 = sadd.s32 1, %s26
      %s36 = scalar_select %p33, %s35, %s26
      %p37 = scmp.ge.s32.totalorder %s36, 2
      %s38 = scalar_select %p37, 0, %s36
      %s40 = sadd.s32 %s39, 1
      %p43 = scmp.eq.s32.totalorder %s19, 1
      %p44 = scmp.ne.s32.totalorder %s39, %s41
      %p45 = scmp.eq.s32.totalorder %s19, 0
      %p46 = por %p44, %p45
      %p47 = scmp.ne.s32.totalorder %s39, %s41
      %p48 = scmp.eq.s32.totalorder %s24, 1
      %p49 = por %p47, %p48
      %p50 = scmp.ne.s32.totalorder %s41, %s42
      %p51 = scmp.eq.s32.totalorder %s24, 0
      %p52 = por %p50, %p51
      %p53 = scmp.ne.s32.totalorder %s41, %s42
      %p54 = scmp.eq.s32.totalorder %s25, 1
      %p55 = por %p53, %p54
      %p57 = scmp.ne.s32.totalorder %s42, %s56
      %p58 = scmp.eq.s32.totalorder %s25, 0
      %p59 = por %p57, %p58
      %s61 = sadd.s32 %s60, 1
      %p64 = scmp.eq.s32.totalorder %s19, 1
      %p65 = scmp.ne.s32.totalorder %s60, %s62
      %p66 = scmp.eq.s32.totalorder %s19, 0
      %p67 = por %p65, %p66
      %p68 = scmp.ne.s32.totalorder %s60, %s62
      %p69 = scmp.eq.s32.totalorder %s24, 1
      %p70 = por %p68, %p69
      %p71 = scmp.ne.s32.totalorder %s62, %s63
      %p72 = scmp.eq.s32.totalorder %s24, 0
      %p73 = por %p71, %p72
      %p74 = scmp.ne.s32.totalorder %s62, %s63
      %p75 = scmp.eq.s32.totalorder %s25, 1
      %p76 = por %p74, %p75
      %p78 = scmp.ne.s32.totalorder %s63, %s77
      %p79 = scmp.eq.s32.totalorder %s25, 0
      %p80 = por %p78, %p79
      %s81 = ssub.s32 %s26, %s38
      %s82 = ssub.s32 %s27, %s34
      %s83 = sor.u32 %s81, %s82
      %p84 = scmp.eq.s32.totalorder %s83, 0
      %s86 = sadd.s32 %s85, 1
      %s87 = scalar_select %p84, %s85, %s86
      %p90 = pneg %p84
      %p91 = scmp.eq.s32.totalorder %s19, 1
      %p92 = por %p90, %p91
      %p93 = scmp.ne.s32.totalorder %s85, %s88
      %p94 = scmp.eq.s32.totalorder %s19, 0
      %p95 = por %p93, %p94
      %p96 = scmp.ne.s32.totalorder %s85, %s88
      %p97 = scmp.eq.s32.totalorder %s24, 1
      %p98 = por %p96, %p97
      %p99 = scmp.ne.s32.totalorder %s88, %s89
      %p100 = scmp.eq.s32.totalorder %s24, 0
      %p101 = por %p99, %p100
      %p102 = scmp.ne.s32.totalorder %s88, %s89
      %p103 = scmp.eq.s32.totalorder %s25, 1
      %p104 = por %p102, %p103
      %p106 = scmp.ne.s32.totalorder %s89, %s105
      %p107 = scmp.eq.s32.totalorder %s25, 0
      %p108 = por %p106, %p107
      %s109 = ssub.s32 %s26, %s38
      %s110 = ssub.s32 %s27, %s34
      %s111 = sor.u32 %s109, %s110
      %p112 = scmp.eq.s32.totalorder %s111, 0
      %s114 = sadd.s32 %s113, 1
      %s115 = scalar_select %p112, %s113, %s114
      %p118 = pneg %p112
      %p119 = scmp.eq.s32.totalorder %s19, 1
      %p120 = por %p118, %p119
      %p121 = scmp.ne.s32.totalorder %s113, %s116
      %p122 = scmp.eq.s32.totalorder %s19, 0
      %p123 = por %p121, %p122
      %p124 = scmp.ne.s32.totalorder %s113, %s116
      %p125 = scmp.eq.s32.totalorder %s24, 1
      %p126 = por %p124, %p125
      %p127 = scmp.ne.s32.totalorder %s116, %s117
      %p128 = scmp.eq.s32.totalorder %s24, 0
      %p129 = por %p127, %p128
      %p130 = scmp.ne.s32.totalorder %s116, %s117
      %p131 = scmp.eq.s32.totalorder %s25, 1
      %p132 = por %p130, %p131
      %p134 = scmp.ne.s32.totalorder %s117, %s133
      %p135 = scmp.eq.s32.totalorder %s25, 0
      %p136 = por %p134, %p135
      %s138 = sadd.s32 %s137, 1
      %p141 = scmp.eq.s32.totalorder %s19, 1
      %p142 = scmp.ne.s32.totalorder %s137, %s139
      %p143 = scmp.eq.s32.totalorder %s19, 0
      %p144 = por %p142, %p143
      %p145 = scmp.ne.s32.totalorder %s137, %s139
      %p146 = scmp.eq.s32.totalorder %s24, 1
      %p147 = por %p145, %p146
      %p148 = scmp.ne.s32.totalorder %s139, %s140
      %p149 = scmp.eq.s32.totalorder %s24, 0
      %p150 = por %p148, %p149
      %p151 = scmp.ne.s32.totalorder %s139, %s140
      %p152 = scmp.eq.s32.totalorder %s25, 1
      %p153 = por %p151, %p152
      %p155 = scmp.ne.s32.totalorder %s140, %s154
      %p156 = scmp.eq.s32.totalorder %s25, 0
      %p157 = por %p155, %p156
      %s158 = ssub.s32 %s26, %s38
      %p159 = scmp.eq.s32.totalorder %s158, 0
      %s161 = sadd.s32 %s160, 1
      %s162 = scalar_select %p159, %s160, %s161
      %p165 = pneg %p159
      %p166 = scmp.eq.s32.totalorder %s19, 1
      %p167 = por %p165, %p166
      %p168 = scmp.ne.s32.totalorder %s160, %s163
      %p169 = scmp.eq.s32.totalorder %s19, 0
      %p170 = por %p168, %p169
      %p171 = scmp.ne.s32.totalorder %s160, %s163
      %p172 = scmp.eq.s32.totalorder %s24, 1
      %p173 = por %p171, %p172
      %p174 = scmp.ne.s32.totalorder %s163, %s164
      %p175 = scmp.eq.s32.totalorder %s24, 0
      %p176 = por %p174, %p175
      %p177 = scmp.ne.s32.totalorder %s163, %s164
      %p178 = scmp.eq.s32.totalorder %s25, 1
      %p179 = por %p177, %p178
      %p181 = scmp.ne.s32.totalorder %s164, %s180
      %p182 = scmp.eq.s32.totalorder %s25, 0
      %p183 = por %p181, %p182
      %p184 = scmp.le.s32.totalorder 1, %s19
      %p185 = scmp.lt.s32.totalorder %s19, 3
      %p186 = pnand %p184, %p185
      %p187 = pneg %p186
      // Predicated region
      $region9: #{tpu_custom_call.1} parent=5 // pred_check
        _
      $region10: #{tpu_custom_call.1} parent=5 // pred_check_branch
        %189 = sbr.rel (%p186) target = $region12
      $region11: #{tpu_custom_call.1} parent=5 // pred_region
        %s190 = ssub.s32 %s19, 1
        // Predicated region
        $region13: #{tpu_custom_call.1} parent=11 // pred_check
          %p191 = pneg %p52
        $region14: #{tpu_custom_call.1} parent=11 // pred_check_branch
          %193 = sbr.rel (%p191) target = $region16
        $region15: #{tpu_custom_call.1} parent=11 // pred_region
          %s195 = ssub.s32 16, 16
          %196 = vsyncadd [#allocation5], %s195
          %199 = dma.hbm_to_smem %s0, 16, [#allocation3], [#allocation5]
        $region16: #{tpu_custom_call.1} parent=11 // pred_fallthru
          _
        // Predicated region
        $region17: #{tpu_custom_call.1} parent=11 // pred_check
          %p200 = pneg %p73
        $region18: #{tpu_custom_call.1} parent=11 // pred_check_branch
          %202 = sbr.rel (%p200) target = $region20
        $region19: #{tpu_custom_call.1} parent=11 // pred_region
          %s204 = ssub.s32 16, 16
          %205 = vsyncadd [#allocation6], %s204
          %s207 = sshll.u32 %s1, 4
          %s208 = int_to_ptr.vmem [resolvable:$true] %s207
          %210 = dma.vmem_to_smem %s208, 16, [#allocation7], [#allocation6]
        $region20: #{tpu_custom_call.1} parent=11 // pred_fallthru
          _
        // Predicated region
        $region21: #{tpu_custom_call.1} parent=11 // pred_check
          %p211 = pneg %p150
        $region22: #{tpu_custom_call.1} parent=11 // pred_check_branch
          %213 = sbr.rel (%p211) target = $region24
        $region23: #{tpu_custom_call.1} parent=11 // pred_region
          _
        $region24: #{tpu_custom_call.1} parent=11 // pred_fallthru
          _
      $region12: #{tpu_custom_call.1} parent=5 // pred_fallthru
        _
      %p214 = scmp.lt.s32.totalorder %s19, 2
      // Predicated region
      $region25: #{tpu_custom_call.1} parent=5 // pred_check
        %p215 = pneg %p214
      $region26: #{tpu_custom_call.1} parent=5 // pred_check_branch
        %217 = sbr.rel (%p215) target = $region28
      $region27: #{tpu_custom_call.1} parent=5 // pred_region
        // Predicated region
        $region29: #{tpu_custom_call.1} parent=27 // pred_check
          %p218 = pneg %p95
        $region30: #{tpu_custom_call.1} parent=27 // pred_check_branch
          %220 = sbr.rel (%p218) target = $region32
        $region31: #{tpu_custom_call.1} parent=27 // pred_region
          %s221 = sand.u32 %s85, 1
          %s222 = scalar_lea.sflag [#allocation4], %s221
          %s223 = sand.u32 %s85, 1
          %s224 = smul.addr %s223, 4
          %s225 = scalar_lea.vmem [#allocation8], %s224
          %s226 = smul.u32 2, %s27
          %s228 = ssub.s32 64, 64
          %229 = vsyncadd %s222, %s228
          %s230 = smul.addr %s26, 2
          %s231 = sadd.s32 %s226, %s230
          %s232 = smul.addr %s231, 32
          %s233 = scalar_lea.hbm %s2, %s232
          %s235 = sshll.u32 %s225, 4
          %s236 = int_to_ptr.vmem [resolvable:$true] %s235
          %238 = dma.hbm_to_vmem [thread:$0]  %s233, 64, %s236, %s222
        $region32: #{tpu_custom_call.1} parent=27 // pred_fallthru
          _
        // Predicated region
        $region33: #{tpu_custom_call.1} parent=27 // pred_check
          %p239 = pneg %p123
        $region34: #{tpu_custom_call.1} parent=27 // pred_check_branch
          %241 = sbr.rel (%p239) target = $region36
        $region35: #{tpu_custom_call.1} parent=27 // pred_region
          %s242 = sand.u32 %s113, 1
          %s243 = scalar_lea.sflag [#allocation10], %s242
          %s244 = sand.u32 %s113, 1
          %s245 = smul.addr %s244, 4
          %s246 = scalar_lea.vmem [#allocation9], %s245
          %s247 = smul.u32 2, %s27
          %s249 = ssub.s32 64, 64
          %250 = vsyncadd %s243, %s249
          %s251 = smul.addr %s26, 2
          %s252 = sadd.s32 %s247, %s251
          %s253 = smul.addr %s252, 32
          %s254 = scalar_lea.hbm %s3, %s253
          %s256 = sshll.u32 %s246, 4
          %s257 = int_to_ptr.vmem [resolvable:$true] %s256
          %259 = dma.hbm_to_vmem [thread:$0]  %s254, 64, %s257, %s243
        $region36: #{tpu_custom_call.1} parent=27 // pred_fallthru
          _
      $region28: #{tpu_custom_call.1} parent=5 // pred_fallthru
        _
      %p260 = scmp.le.s32.totalorder 1, %s19
      %p261 = scmp.lt.s32.totalorder %s19, 3
      %p262 = pnand %p260, %p261
      %p263 = pneg %p262
      // Predicated region
      $region37: #{tpu_custom_call.1} parent=5 // pred_check
        _
      $region38: #{tpu_custom_call.1} parent=5 // pred_check_branch
        %265 = sbr.rel (%p262) target = $region40
      $region39: #{tpu_custom_call.1} parent=5 // pred_region
        %s266 = ssub.s32 %s19, 1
        // Predicated region
        $region41: #{tpu_custom_call.1} parent=39 // pred_check
          %p267 = pneg %p52
        $region42: #{tpu_custom_call.1} parent=39 // pred_check_branch
          %269 = sbr.rel (%p267) target = $region44
        $region43: #{tpu_custom_call.1} parent=39 // pred_region
          %270 = dma.done [#allocation5], 16
        $region44: #{tpu_custom_call.1} parent=39 // pred_fallthru
          _
        // Predicated region
        $region45: #{tpu_custom_call.1} parent=39 // pred_check
          %p271 = pneg %p73
        $region46: #{tpu_custom_call.1} parent=39 // pred_check_branch
          %273 = sbr.rel (%p271) target = $region48
        $region47: #{tpu_custom_call.1} parent=39 // pred_region
          %274 = dma.done [#allocation6], 16
        $region48: #{tpu_custom_call.1} parent=39 // pred_fallthru
          _
        %s275 = sand.u32 %s88, 1
        %s276 = scalar_lea.sflag [#allocation4], %s275
        %s277 = sand.u32 %s88, 1
        %s278 = smul.addr %s277, 4
        %s279 = scalar_lea.vmem [#allocation8], %s278
        // Predicated region
        $region49: #{tpu_custom_call.1} parent=39 // pred_check
          %p280 = pneg %p101
        $region50: #{tpu_custom_call.1} parent=39 // pred_check_branch
          %282 = sbr.rel (%p280) target = $region52
        $region51: #{tpu_custom_call.1} parent=39 // pred_region
          %283 = dma.done %s276, 64
        $region52: #{tpu_custom_call.1} parent=39 // pred_fallthru
          _
        %s284 = sand.u32 %s116, 1
        %s285 = scalar_lea.sflag [#allocation10], %s284
        %s286 = sand.u32 %s116, 1
        %s287 = smul.addr %s286, 4
        %s288 = scalar_lea.vmem [#allocation9], %s287
        // Predicated region
        $region53: #{tpu_custom_call.1} parent=39 // pred_check
          %p289 = pneg %p129
        $region54: #{tpu_custom_call.1} parent=39 // pred_check_branch
          %291 = sbr.rel (%p289) target = $region56
        $region55: #{tpu_custom_call.1} parent=39 // pred_region
          %292 = dma.done %s285, 64
        $region56: #{tpu_custom_call.1} parent=39 // pred_fallthru
          _
        %293 = sfence
        %p294 = pneg %p52
        %p295 = pneg %p49
        %p296 = pneg %p73
        %p297 = pneg %p70
        %s298 = sand.u32 %s88, 1
        %s299 = scalar_lea.sflag [#allocation4], %s298
        %s300 = sand.u32 %s88, 1
        %s301 = smul.addr %s300, 4
        %s302 = scalar_lea.vmem [#allocation8], %s301
        %p303 = pneg %p101
        %p304 = pneg %p98
        %s305 = sand.u32 %s116, 1
        %s306 = scalar_lea.sflag [#allocation10], %s305
        %s307 = sand.u32 %s116, 1
        %s308 = smul.addr %s307, 4
        %s309 = scalar_lea.vmem [#allocation9], %s308
        %p310 = pneg %p129
        %p311 = pneg %p126
        %p312 = pneg %p150
        %p313 = pneg %p147
        %p314 = pneg %p176
        %p315 = pneg %p173
        %p316 = scmp.lt.s32.totalorder %s28, 1
        %s317 = scalar_select %p316, %s28, 1
        %s318 = scalar_lea.vmem %s5, %s317
        %s319 = smul.u32 2, %s29
        %s320 = smul.u32 2, %s29
        %p321 = scmp.lt.s32.totalorder %s28, 1
        %s322 = scalar_select %p321, %s28, 1
        %s323 = scalar_lea.vmem %s5, %s322
        %p324 = scmp.eq.s32.totalorder %s29, 0
        // Predicated region
        $region57: #{tpu_custom_call.1} parent=39 // pred_check
          %p325 = pneg %p324
        $region58: #{tpu_custom_call.1} parent=39 // pred_check_branch
          %327 = sbr.rel (%p325) target = $region60
        $region59: #{tpu_custom_call.1} parent=39 // pred_region
          %328 = vst [vmem:[#allocation2] sm:$0xff] 0.0
        $region60: #{tpu_custom_call.1} parent=39 // pred_fallthru
          _
        %v329 = vld [vmem:[%s279] sm:$0xf]
        %v330 = vunpack.c.l.bf16 %v329
        %v331 = vld [vmem:[%s288] sm:$0xf]
        %v332 = vunpack.c.l.bf16 %v331
        %s333 = sld [smem:[#allocation3 + %s28]]
        %v334 = vstv %s333
        %v335 = vmul.f32 %v334, %v330
        %s336 = sld [smem:[#allocation7 + %s28]]
        %v337 = vstv %s336
        %v338 = vmul.f32 %v337, %v332
        %v339 = vadd.f32 %v335, %v338
        %v340 = vld [vmem:[%s4] sm:$0xf]
        %342 = vset.pattern.permute.xlu0 0
        %343 = vperm.xlu0 %342, %v340
        %v344 = vpop.permute.xlu0 %343
        %v347 = vlaneseq
        %v348 = vshrl.u32 %v347, 7
        %v349 = vsub.s32 0, %v348
        %v350 = vrot.slane %v339, %v349
        %v351 = vlaneseq
        %v352 = vshrl.u32 %v351, 7
        %v353 = vsub.s32 4, %v352
        %v354 = vrot.slane %v339, %v353
        %v357 = vlaneseq
        %v358 = vshrl.u32 %v357, 7
        %v359 = vsub.s32 0, %v358
        %v360 = vrot.slane %v350, %v359
        %v361 = vlaneseq
        %v362 = vshrl.u32 %v361, 7
        %v363 = vsub.s32 0, %v362
        %v364 = vrot.slane %v354, %v363
        %v365 = vmul.f32 %v344, %v360
        %v366 = vmul.f32 %v344, %v364
        %367 = vset.pattern.permute.xlu0 1
        %368 = vperm.xlu0 %367, %v340
        %v369 = vpop.permute.xlu0 %368
        %v371 = vlaneseq
        %v372 = vshrl.u32 %v371, 7
        %v373 = vsub.s32 1, %v372
        %v374 = vrot.slane %v339, %v373
        %v375 = vlaneseq
        %v376 = vshrl.u32 %v375, 7
        %v377 = vsub.s32 5, %v376
        %v378 = vrot.slane %v339, %v377
        %v381 = vlaneseq
        %v382 = vshrl.u32 %v381, 7
        %v383 = vsub.s32 1, %v382
        %v384 = vrot.slane %v374, %v383
        %v385 = vlaneseq
        %v386 = vshrl.u32 %v385, 7
        %v387 = vsub.s32 1, %v386
        %v388 = vrot.slane %v378, %v387
        %v389 = vmul.f32 %v369, %v384
        %v390 = vmul.f32 %v369, %v388
        %v391 = vadd.f32 %v365, %v389
        %v392 = vadd.f32 %v366, %v390
        %393 = vset.pattern.permute.xlu0 2
        %394 = vperm.xlu0 %393, %v340
        %v395 = vpop.permute.xlu0 %394
        %v397 = vlaneseq
        %v398 = vshrl.u32 %v397, 7
        %v399 = vsub.s32 2, %v398
        %v400 = vrot.slane %v339, %v399
        %v401 = vlaneseq
        %v402 = vshrl.u32 %v401, 7
        %v403 = vsub.s32 6, %v402
        %v404 = vrot.slane %v339, %v403
        %v407 = vlaneseq
        %v408 = vshrl.u32 %v407, 7
        %v409 = vsub.s32 2, %v408
        %v410 = vrot.slane %v400, %v409
        %v411 = vlaneseq
        %v412 = vshrl.u32 %v411, 7
        %v413 = vsub.s32 2, %v412
        %v414 = vrot.slane %v404, %v413
        %v415 = vmul.f32 %v395, %v410
        %v416 = vmul.f32 %v395, %v414
        %v417 = vadd.f32 %v391, %v415
        %v418 = vadd.f32 %v392, %v416
        %419 = vset.pattern.permute.xlu0 3
        %420 = vperm.xlu0 %419, %v340
        %v421 = vpop.permute.xlu0 %420
        %v423 = vlaneseq
        %v424 = vshrl.u32 %v423, 7
        %v425 = vsub.s32 3, %v424
        %v426 = vrot.slane %v339, %v425
        %v427 = vlaneseq
        %v428 = vshrl.u32 %v427, 7
        %v429 = vsub.s32 7, %v428
        %v430 = vrot.slane %v339, %v429
        %v433 = vlaneseq
        %v434 = vshrl.u32 %v433, 7
        %v435 = vsub.s32 3, %v434
        %v436 = vrot.slane %v426, %v435
        %v437 = vlaneseq
        %v438 = vshrl.u32 %v437, 7
        %v439 = vsub.s32 3, %v438
        %v440 = vrot.slane %v430, %v439
        %v441 = vmul.f32 %v421, %v436
        %v442 = vmul.f32 %v421, %v440
        %v443 = vadd.f32 %v417, %v441
        %v444 = vadd.f32 %v418, %v442
        %v446 = vcombine.high %v332, %v332
        %v448 = vsub.f32 %v443, %v332
        %v449 = vsub.f32 %v444, %v446
        %v450 = vand.u32 2147483647, %v448
        %v451 = vand.u32 2147483647, %v449
        %vm452 = vcmp.lt.f32.partialorder %v450, 1.0
        %vm453 = vcmp.lt.f32.partialorder %v451, 1.0
        %v454 = vmul.f32 %v448, 0.5
        %v455 = vmul.f32 %v449, 0.5
        %v456 = vmul.f32 %v454, %v448
        %v457 = vmul.f32 %v455, %v449
        %v458 = vsub.f32 %v450, 0.5
        %v459 = vsub.f32 %v451, 0.5
        %v460 = vsel %vm452, %v456, %v458
        %v461 = vsel %vm453, %v457, %v459
        %v462 = vld [vmem:[#allocation2] sm:$0xff]
        %v465 = vcombine.low %v460, %v461
        %v467 = vadd.f32 %v462, %v465
        %468 = vst [vmem:[#allocation2] sm:$0xff] %v467
        // Predicated region
        $region61: #{tpu_custom_call.1} parent=39 // pred_check
          %p469 = pneg %p324
        $region62: #{tpu_custom_call.1} parent=39 // pred_check_branch
          %471 = sbr.rel (%p469) target = $region64
        $region63: #{tpu_custom_call.1} parent=39 // pred_region
          %v472 = vld [vmem:[#allocation2] sm:$0xff]
          %v474 = vcombine.high %v472, %v472
          %vm476 = vcmask 1043456
          %v477 = vsel %vm476, %v472, 0.0
          %v478 = vsel %vm476, %v474, 0.0
          %v479 = vadd.f32 %v477, %v478
          %480 = vadd.xlane.f32.xlu0 %v479
          %v481 = vpop.xlane.xlu0 %480
          %v482 = vrot.slane %v481, 4
          %v483 = vadd.f32 %v481, %v482
          %v484 = vrot.slane %v483, 2
          %v485 = vadd.f32 %v483, %v484
          %v486 = vrot.slane %v485, 1
          %v487 = vadd.f32 %v485, %v486
          %s488 = vtos %v487
          %v489 = vstv %s488
          %vm490 = vcmask 0
          %491 = vst.msk [vmem:[%s323] sm:$0x1] %vm490, %v489
        $region64: #{tpu_custom_call.1} parent=39 // pred_fallthru
          _
        %p492 = scmp.lt.s32.totalorder %s28, 1
        %s493 = scalar_select %p492, %s28, 1
        %s494 = scalar_lea.vmem %s5, %s493
        // Predicated region
        $region65: #{tpu_custom_call.1} parent=39 // pred_check
          %p495 = pneg %p173
        $region66: #{tpu_custom_call.1} parent=39 // pred_check_branch
          %497 = sbr.rel (%p495) target = $region68
        $region67: #{tpu_custom_call.1} parent=39 // pred_region
          _
        $region68: #{tpu_custom_call.1} parent=39 // pred_fallthru
          _
      $region40: #{tpu_custom_call.1} parent=5 // pred_fallthru
        _
      %p498 = scmp.le.s32.totalorder 2, %s19
      // Predicated region
      $region69: #{tpu_custom_call.1} parent=5 // pred_check
        %p499 = pneg %p498
      $region70: #{tpu_custom_call.1} parent=5 // pred_check_branch
        %501 = sbr.rel (%p499) target = $region72
      $region71: #{tpu_custom_call.1} parent=5 // pred_region
        %s502 = ssub.s32 %s19, 2
        // Predicated region
        $region73: #{tpu_custom_call.1} parent=71 // pred_check
          %p503 = pneg %p179
        $region74: #{tpu_custom_call.1} parent=71 // pred_check_branch
          %505 = sbr.rel (%p503) target = $region76
        $region75: #{tpu_custom_call.1} parent=71 // pred_region
          %p506 = scmp.lt.s32.totalorder %s30, 1
          %s507 = scalar_select %p506, %s30, 1
          %s508 = scalar_lea.vmem %s5, %s507
        $region76: #{tpu_custom_call.1} parent=71 // pred_fallthru
          _
      $region72: #{tpu_custom_call.1} parent=5 // pred_fallthru
        _
    $region6: #{tpu_custom_call.1} parent=1 // loop_footer
      %s23 = sadd.s32 1, %s19
    $region7: #{tpu_custom_call.1} parent=1 // loop_footer_branch
      %18 = sbr.rel target = $region3
    $region8: #{tpu_custom_call.1} parent=1 // loop_exit
      _
    %509 = vsyncpa [#allocation4], 1
    %s510 = scalar_lea.sflag [#allocation4], 1
    %511 = vsyncpa %s510, 1
    %512 = vsyncpa [#allocation10], 1
    %s513 = scalar_lea.sflag [#allocation10], 1
    %514 = vsyncpa %s513, 1
    %515 = vsyncpa [#allocation5], 1
    %s516 = scalar_lea.sflag [#allocation5], 1
    %517 = vsyncpa %s516, 1
    %518 = vsyncpa [#allocation6], 1
    %s519 = scalar_lea.sflag [#allocation6], 1
    %520 = vsyncpa %s519, 1

</llo_original>
